<compile_context>
chip_gen: v6e
topology: v6e:2x2x1
jax: 0.10.0
libtpu: 0.0.40
codegen_flags: <defaults>
</compile_context>

<pallas_src>
import jax
import jax.numpy as jnp
from jax.experimental import pallas as pl
from jax.experimental.pallas import tpu as pltpu


# -----------------------------------------------------------------------------
# Helpers for tiling
# -----------------------------------------------------------------------------
def _round_up(x, m):
    return ((x + m - 1) // m) * m


def _choose_tm(m, target=1024):
    """Lane-axis tile: multiple of 128, large enough to amortize ~0.35us/step,
    small enough that the grid keeps >= 2 parallel steps (v7x has 2 TCs)."""
    tm = min(target, _round_up(m, 128))
    while tm > 128 and pl.cdiv(m, tm) < 2:
        tm = _round_up(tm // 2, 128)
    return tm


# -----------------------------------------------------------------------------
# Pallas kernel 1: fused conv1(1x1) + conv2(3x3) producing `cat` directly.
#   rows 0:Cin       = PReLU(BN(conv2(y_high)))   (matches torch.cat order)
#   rows Cin:2*Cin   = PReLU(BN(conv1(x_gui)))
# Weights carry the folded BN scale; bias/alpha applied in f32 epilogue.
# -----------------------------------------------------------------------------
def _make_cat_kernel(cin):
    def kernel(y2col_ref, x1_ref, w2_ref, w1_ref,
               b2_ref, a2_ref, b1_ref, a1_ref, o_ref):
        y2 = jnp.dot(w2_ref[...], y2col_ref[...],
                     preferred_element_type=jnp.float32)
        y2 = y2 + b2_ref[...]
        y2 = jnp.where(y2 > 0.0, y2, a2_ref[...] * y2)
        o_ref[0:cin, :] = y2.astype(o_ref.dtype)

        y1 = jnp.dot(w1_ref[...], x1_ref[...],
                     preferred_element_type=jnp.float32)
        y1 = y1 + b1_ref[...]
        y1 = jnp.where(y1 > 0.0, y1, a1_ref[...] * y1)
        o_ref[cin:2 * cin, :] = y1.astype(o_ref.dtype)
    return kernel


def fused_cat_conv(y_col, x_flat, w2_ok, w1_ok, b2, a2, b1, a1,
                   *, out_dtype=jnp.bfloat16, tm_target=1024):
    """y_col: (9*Cin, M) im2col of upsampled y_high; x_flat: (Cin, M) x_gui.
    Returns cat = (2*Cin, M): [conv2(y_high); conv1(x_gui)]."""
    Cin, M = x_flat.shape
    K2 = y_col.shape[0]
    Cout = 2 * Cin

    tm = _choose_tm(M, tm_target)
    m_pad = _round_up(M, tm)
    if m_pad != M:                                   # ragged tail -> zero pad
        x_flat = jnp.pad(x_flat, ((0, 0), (0, m_pad - M)))
        y_col = jnp.pad(y_col, ((0, 0), (0, m_pad - M)))
    grid = m_pad // tm

    out = pl.pallas_call(
        _make_cat_kernel(Cin),
        out_shape=jax.ShapeDtypeStruct((Cout, m_pad), out_dtype),
        grid=(grid,),
        in_specs=[
            pl.BlockSpec((K2, tm), lambda i: (0, i)),     # y_high patches
            pl.BlockSpec((Cin, tm), lambda i: (0, i)),    # x_gui pixels
            pl.BlockSpec((Cin, K2), lambda i: (0, 0)),    # w2 (resident)
            pl.BlockSpec((Cin, Cin), lambda i: (0, 0)),   # w1 (resident)
            pl.BlockSpec((Cin, 1), lambda i: (0, 0)),     # b2
            pl.BlockSpec((Cin, 1), lambda i: (0, 0)),     # alpha2
            pl.BlockSpec((Cin, 1), lambda i: (0, 0)),     # b1
            pl.BlockSpec((Cin, 1), lambda i: (0, 0)),     # alpha1
        ],
        out_specs=pl.BlockSpec((Cout, tm), lambda i: (0, i)),
        compiler_params=pltpu.CompilerParams(
            dimension_semantics=("parallel",),
            vmem_limit_bytes=32 * 1024 * 1024),
    )(y_col.astype(jnp.bfloat16), x_flat.astype(jnp.bfloat16),
      w2_ok.astype(jnp.bfloat16), w1_ok.astype(jnp.bfloat16),
      b2.reshape(Cin, 1).astype(jnp.float32),
      a2.reshape(Cin, 1).astype(jnp.float32),
      b1.reshape(Cin, 1).astype(jnp.float32),
      a1.reshape(Cin, 1).astype(jnp.float32))

    return out[:, :M] if m_pad != M else out


# -----------------------------------------------------------------------------
# Pallas kernel 2:  O(Cout, TM) = PReLU( W(Cout,K) @ X(K,TM) + bias )
#   Used for conv3 (3x3, 2*Cin -> 4*outC).  W carries folded BN scale.
# -----------------------------------------------------------------------------
def _matmul_bias_prelu_kernel(w_ref, x_ref, bias_ref, alpha_ref, o_ref):
    y = jnp.dot(w_ref[...], x_ref[...], preferred_element_type=jnp.float32)
    y = y + bias_ref[...]                                  # folded-BN bias
    y = jnp.where(y > 0.0, y, alpha_ref[...] * y)          # PReLU
    o_ref[...] = y.astype(o_ref.dtype)


def fused_convT_bias_prelu(x_km, w_ok, bias, alpha, *, out_dtype=jnp.float32,
                           tm_target=1024):
    """x_km: (K, M) activations; w_ok: (Cout, K) with BN scale folded in;
    bias / alpha: (Cout,).  Returns (Cout, M) in `out_dtype`."""
    K, M = x_km.shape
    Cout = w_ok.shape[0]

    tm = _choose_tm(M, tm_target)
    m_pad = _round_up(M, tm)
    if m_pad != M:
        x_km = jnp.pad(x_km, ((0, 0), (0, m_pad - M)))
    grid = m_pad // tm

    out = pl.pallas_call(
        _matmul_bias_prelu_kernel,
        out_shape=jax.ShapeDtypeStruct((Cout, m_pad), out_dtype),
        grid=(grid,),
        in_specs=[
            pl.BlockSpec((Cout, K), lambda i: (0, 0)),    # weights stay resident
            pl.BlockSpec((K, tm), lambda i: (0, i)),      # lane-dense X tile
            pl.BlockSpec((Cout, 1), lambda i: (0, 0)),    # bias
            pl.BlockSpec((Cout, 1), lambda i: (0, 0)),    # PReLU alpha
        ],
        out_specs=pl.BlockSpec((Cout, tm), lambda i: (0, i)),  # lane-dense out
        compiler_params=pltpu.CompilerParams(
            dimension_semantics=("parallel",),
            vmem_limit_bytes=32 * 1024 * 1024),
    )(w_ok.astype(jnp.bfloat16), x_km.astype(jnp.bfloat16),
      bias.reshape(Cout, 1).astype(jnp.float32),
      alpha.reshape(Cout, 1).astype(jnp.float32))

    return out[:, :M] if m_pad != M else out


# -----------------------------------------------------------------------------
# Plain-JAX glue
# -----------------------------------------------------------------------------
def upsample_bilinear_align_corners(x, out_h, out_w):
    """x: (A, B, Hin, Win) -> (A, B, out_h, out_w), align_corners=True."""
    Hin, Win = x.shape[2], x.shape[3]
    hs = (jnp.linspace(0.0, Hin - 1.0, out_h) if out_h > 1
          else jnp.zeros((out_h,), jnp.float32))
    ws = (jnp.linspace(0.0, Win - 1.0, out_w) if out_w > 1
          else jnp.zeros((out_w,), jnp.float32))
    h0 = jnp.floor(hs).astype(jnp.int32)
    h1 = jnp.clip(h0 + 1, 0, Hin - 1)
    fh = (hs - h0.astype(jnp.float32))[None, None, :, None]
    w0 = jnp.floor(ws).astype(jnp.int32)
    w1 = jnp.clip(w0 + 1, 0, Win - 1)
    fw = (ws - w0.astype(jnp.float32))[None, None, None, :]

    x00 = x[:, :, h0][:, :, :, w0]
    x01 = x[:, :, h0][:, :, :, w1]
    x10 = x[:, :, h1][:, :, :, w0]
    x11 = x[:, :, h1][:, :, :, w1]
    top = x00 * (1.0 - fw) + x01 * fw
    bot = x10 * (1.0 - fw) + x11 * fw
    return top * (1.0 - fh) + bot * fh


# TODO(synk): do the 3x3 im2col inside the kernel (halo-row tiles DMA'd from a
# padded NHWC array) to avoid the ~9x HBM expansion of the patch matrix.
def im2col_3x3_cm(x_cnhw):
    """x: (C, N, H, W) -> (9*C, N*H*W); 3x3, pad=1, stride=1.
    K ordering is (dh, dw)-major, channel-minor: k = (dh*3+dw)*C + c."""
    C, N, H, W = x_cnhw.shape
    xp = jnp.pad(x_cnhw, ((0, 0), (0, 0), (1, 1), (1, 1)))
    patches = [xp[:, :, dh:dh + H, dw:dw + W]
               for dh in range(3) for dw in range(3)]
    return jnp.concatenate(patches, axis=0).reshape(9 * C, N * H * W)


def conv_weight_ok(w_oihw):
    """PyTorch (Cout, Cin, kh, kw) -> (Cout, kh*kw*Cin), matching im2col_3x3_cm."""
    Cout, Cin, kh, kw = w_oihw.shape
    return jnp.transpose(w_oihw, (0, 2, 3, 1)).reshape(Cout, kh * kw * Cin)


def fold_bn(gamma, beta, mean, var, eps=1e-5):
    scale = gamma / jnp.sqrt(var + eps)
    bias = beta - mean * scale
    return scale, bias


# -----------------------------------------------------------------------------
# Parameter construction (deterministic, synthetic)
# -----------------------------------------------------------------------------
def init_params(key, in_channels, out_channels):
    def bn(key, c):
        k1, k2, k3, k4 = jax.random.split(key, 4)
        gamma = 1.0 + 0.1 * jax.random.normal(k1, (c,), jnp.float32)
        beta = 0.1 * jax.random.normal(k2, (c,), jnp.float32)
        mean = 0.1 * jax.random.normal(k3, (c,), jnp.float32)
        var = 0.5 + jax.random.uniform(k4, (c,), jnp.float32)
        return gamma, beta, mean, var

    ks = jax.random.split(key, 6)
    c4o = 4 * out_channels
    return {
        "w1": 0.1 * jax.random.normal(ks[0], (in_channels, in_channels, 1, 1),
                                      jnp.float32),
        "bn1": bn(ks[1], in_channels),
        "alpha1": jnp.full((in_channels,), 0.25, jnp.float32),
        "w2": 0.1 * jax.random.normal(ks[2], (in_channels, in_channels, 3, 3),
                                      jnp.float32),
        "bn2": bn(ks[3], in_channels),
        "alpha2": jnp.full((in_channels,), 0.25, jnp.float32),
        "w3": 0.1 * jax.random.normal(ks[4], (c4o, 2 * in_channels, 3, 3),
                                      jnp.float32),
        "bn3": bn(ks[5], c4o),
        "alpha3": jnp.full((c4o,), 0.25, jnp.float32),
    }


# -----------------------------------------------------------------------------
# DSCModule forward (Pallas path)
# -----------------------------------------------------------------------------
@jax.jit
def dsc_forward(params, x_gui, y_high):
    N, Cin, H, W = x_gui.shape
    M = N * H * W

    # Upsample y_high to (H, W), bilinear, align_corners=True (f32 math).
    y_cm = jnp.transpose(y_high, (1, 0, 2, 3)).astype(jnp.float32)
    y_cm = upsample_bilinear_align_corners(y_cm, H, W)        # (Cin, N, H, W)
    x_cm = jnp.transpose(x_gui, (1, 0, 2, 3)).astype(jnp.float32)

    # Channels-major, spatial-last activations; bf16 halves glue HBM traffic.
    x_flat = x_cm.reshape(Cin, M).astype(jnp.bfloat16)        # conv1 input
    y_col = im2col_3x3_cm(y_cm.astype(jnp.bfloat16))          # (9*Cin, M)

    # --- conv1 (1x1) + conv2 (3x3) fused in one pallas_call ------------------
    s1, b1 = fold_bn(*params["bn1"])
    s2, b2 = fold_bn(*params["bn2"])
    w1_ok = conv_weight_ok(params["w1"]) * s1[:, None]        # (Cin, Cin)
    w2_ok = conv_weight_ok(params["w2"]) * s2[:, None]        # (Cin, 9*Cin)

    cat = fused_cat_conv(y_col, x_flat, w2_ok, w1_ok,
                         b2, params["alpha2"], b1, params["alpha1"],
                         out_dtype=jnp.bfloat16)              # (2*Cin, M)

    # --- conv3 (3x3, 2*Cin -> 4*outC) + PixelShuffle(2) ----------------------
    s3, b3 = fold_bn(*params["bn3"])
    w3_ok = conv_weight_ok(params["w3"]) * s3[:, None]        # (4*outC, 18*Cin)
    cat_cm = cat.reshape(2 * Cin, N, H, W)
    out3 = fused_convT_bias_prelu(im2col_3x3_cm(cat_cm), w3_ok, b3,
                                  params["alpha3"],
                                  out_dtype=jnp.float32)      # (4*outC, M)

    c4o = params["w3"].shape[0]
    out_c = c4o // 4
    # PixelShuffle(2): channel q = c*4 + i*2 + j  ->  out[n, c, 2h+i, 2w+j]
    o = out3.reshape(out_c, 2, 2, N, H, W)
    o = jnp.transpose(o, (3, 0, 4, 1, 5, 2))                  # (N, C, H, 2, W, 2)
    return o.reshape(N, out_c, 2 * H, 2 * W)


# -----------------------------------------------------------------------------
# Pure-JAX NCHW reference (f32) for a numerical sanity check
# -----------------------------------------------------------------------------
def dsc_forward_reference(params, x_gui, y_high):
    N, Cin, H, W = x_gui.shape
    y_up = upsample_bilinear_align_corners(y_high.astype(jnp.float32), H, W)

    def conv_bn_prelu(x, w, bn, alpha, pad):
        y = jax.lax.conv_general_dilated(
            x, w, (1, 1), [(pad, pad), (pad, pad)],
            dimension_numbers=("NCHW", "OIHW", "NCHW"))
        s, b = fold_bn(*bn)
        y = y * s[None, :, None, None] + b[None, :, None, None]
        return jnp.where(y > 0.0, y, alpha[None, :, None, None] * y)

    x1 = conv_bn_prelu(x_gui.astype(jnp.float32), params["w1"], params["bn1"],
                       params["alpha1"], 0)
    y2 = conv_bn_prelu(y_up, params["w2"], params["bn2"], params["alpha2"], 1)
    cat = jnp.concatenate([y2, x1], axis=1)
    out3 = conv_bn_prelu(cat, params["w3"], params["bn3"], params["alpha3"], 1)
    n, c4, h, w = out3.shape
    c = c4 // 4
    o = out3.reshape(n, c, 2, 2, h, w)
    o = jnp.transpose(o, (0, 1, 4, 2, 5, 3)).reshape(n, c, 2 * h, 2 * w)
    return o


# -----------------------------------------------------------------------------
if __name__ == "__main__":
    key = jax.random.PRNGKey(0)
    k_x, k_y, k_p = jax.random.split(key, 3)

    N, C_in, H, W = 2, 4, 16, 16
    C_out = 4
    x_gui = jax.random.normal(k_x, (N, C_in, H, W), jnp.float32)
    y_high = jax.random.normal(k_y, (N, C_in, H // 2, W // 2), jnp.float32)

    params = init_params(k_p, C_in, C_out)

    out = jax.block_until_ready(dsc_forward(params, x_gui, y_high))

    assert out.shape == (N, C_out, 2 * H, 2 * W), out.shape
    assert out.dtype == jnp.float32
    assert bool(jnp.all(jnp.isfinite(out)))

    # Numerical sanity check vs. pure-JAX f32 reference (bf16-level tolerance).
    ref = jax.block_until_ready(dsc_forward_reference(params, x_gui, y_high))
    max_err = float(jnp.max(jnp.abs(out - ref)))
    assert max_err < 1e-1, f"max abs error vs reference: {max_err}"

    print("KERNEL_OK")
</pallas_src>

<mosaic_0001>
module attributes {stable_mosaic.version = 11 : i64} {
  func.func @kernel(%arg0: i32, %arg1: memref<36x256xbf16, #tpu.memory_space<vmem>>, %arg2: memref<4x256xbf16, #tpu.memory_space<vmem>>, %arg3: memref<4x36xbf16, #tpu.memory_space<vmem>>, %arg4: memref<4x4xbf16, #tpu.memory_space<vmem>>, %arg5: memref<4x1xf32, #tpu.memory_space<vmem>>, %arg6: memref<4x1xf32, #tpu.memory_space<vmem>>, %arg7: memref<4x1xf32, #tpu.memory_space<vmem>>, %arg8: memref<4x1xf32, #tpu.memory_space<vmem>>, %arg9: memref<8x256xbf16, #tpu.memory_space<vmem>>) attributes {dimension_semantics = [#tpu.dimension_semantics<parallel>], iteration_bounds = array<i64: 2>, scalar_prefetch = 0 : i64, scratch_operands = 0 : i64, tpu.core_type = #tpu.core_type<tc>, window_params = [{transform_indices = @transform_0, window_bounds = array<i64: 36, 256>}, {transform_indices = @transform_1, window_bounds = array<i64: 4, 256>}, {pipeline_mode = #tpu.pipeline_mode<synchronous>, transform_indices = @transform_2, window_bounds = array<i64: 4, 36>}, {pipeline_mode = #tpu.pipeline_mode<synchronous>, transform_indices = @transform_3, window_bounds = array<i64: 4, 4>}, {pipeline_mode = #tpu.pipeline_mode<synchronous>, transform_indices = @transform_4, window_bounds = array<i64: 4, 1>}, {pipeline_mode = #tpu.pipeline_mode<synchronous>, transform_indices = @transform_5, window_bounds = array<i64: 4, 1>}, {pipeline_mode = #tpu.pipeline_mode<synchronous>, transform_indices = @transform_6, window_bounds = array<i64: 4, 1>}, {pipeline_mode = #tpu.pipeline_mode<synchronous>, transform_indices = @transform_7, window_bounds = array<i64: 4, 1>}, {transform_indices = @transform_8, window_bounds = array<i64: 8, 256>}]} {
    %c0 = arith.constant 0 : index
    %c0_0 = arith.constant 0 : index
    %0 = vector.load %arg3[%c0, %c0_0] : memref<4x36xbf16, #tpu.memory_space<vmem>>, vector<4x36xbf16>
    %c0_1 = arith.constant 0 : index
    %c0_2 = arith.constant 0 : index
    %1 = vector.load %arg1[%c0_1, %c0_2] : memref<36x256xbf16, #tpu.memory_space<vmem>>, vector<36x256xbf16>
    %cst = arith.constant dense<0.000000e+00> : vector<4x256xf32>
    %2 = tpu.matmul %0, %1, %cst {dimension_numbers = #tpu.dot_dimension_numbers<[1], [0], [0], [1], [0, 0, 1, 1], [], []>} : vector<4x36xbf16>, vector<36x256xbf16>, vector<4x256xf32> -> vector<4x256xf32>
    %c0_3 = arith.constant 0 : index
    %c0_4 = arith.constant 0 : index
    %3 = vector.load %arg5[%c0_3, %c0_4] : memref<4x1xf32, #tpu.memory_space<vmem>>, vector<4x1xf32>
    %4 = vector.broadcast %3 : vector<4x1xf32> to vector<4x256xf32>
    %5 = arith.addf %2, %4 : vector<4x256xf32>
    %cst_5 = arith.constant 0.000000e+00 : f32
    %6 = vector.broadcast %cst_5 : f32 to vector<4x256xf32>
    %7 = arith.cmpf ogt, %5, %6 : vector<4x256xf32>
    %c0_6 = arith.constant 0 : index
    %c0_7 = arith.constant 0 : index
    %8 = vector.load %arg6[%c0_6, %c0_7] : memref<4x1xf32, #tpu.memory_space<vmem>>, vector<4x1xf32>
    %9 = vector.broadcast %8 : vector<4x1xf32> to vector<4x256xf32>
    %10 = arith.mulf %9, %5 : vector<4x256xf32>
    %11 = arith.select %7, %5, %10 : vector<4x256xi1>, vector<4x256xf32>
    %12 = arith.truncf %11 : vector<4x256xf32> to vector<4x256xbf16>
    %c0_8 = arith.constant 0 : index
    %c0_9 = arith.constant 0 : index
    %13 = vector.load %arg9[%c0_8, %c0_9] : memref<8x256xbf16, #tpu.memory_space<vmem>>, vector<4x256xbf16>
    tpu.vector_store %arg9[%c0_8, %c0_9], %12 {strides = array<i32>} : memref<8x256xbf16, #tpu.memory_space<vmem>>, vector<4x256xbf16>,
    %c0_10 = arith.constant 0 : index
    %c0_11 = arith.constant 0 : index
    %14 = vector.load %arg4[%c0_10, %c0_11] : memref<4x4xbf16, #tpu.memory_space<vmem>>, vector<4x4xbf16>
    %c0_12 = arith.constant 0 : index
    %c0_13 = arith.constant 0 : index
    %15 = vector.load %arg2[%c0_12, %c0_13] : memref<4x256xbf16, #tpu.memory_space<vmem>>, vector<4x256xbf16>
    %cst_14 = arith.constant dense<0.000000e+00> : vector<4x256xf32>
    %16 = tpu.matmul %14, %15, %cst_14 {dimension_numbers = #tpu.dot_dimension_numbers<[1], [0], [0], [1], [0, 0, 1, 1], [], []>} : vector<4x4xbf16>, vector<4x256xbf16>, vector<4x256xf32> -> vector<4x256xf32>
    %c0_15 = arith.constant 0 : index
    %c0_16 = arith.constant 0 : index
    %17 = vector.load %arg7[%c0_15, %c0_16] : memref<4x1xf32, #tpu.memory_space<vmem>>, vector<4x1xf32>
    %18 = vector.broadcast %17 : vector<4x1xf32> to vector<4x256xf32>
    %19 = arith.addf %16, %18 : vector<4x256xf32>
    %cst_17 = arith.constant 0.000000e+00 : f32
    %20 = vector.broadcast %cst_17 : f32 to vector<4x256xf32>
    %21 = arith.cmpf ogt, %19, %20 : vector<4x256xf32>
    %c0_18 = arith.constant 0 : index
    %c0_19 = arith.constant 0 : index
    %22 = vector.load %arg8[%c0_18, %c0_19] : memref<4x1xf32, #tpu.memory_space<vmem>>, vector<4x1xf32>
    %23 = vector.broadcast %22 : vector<4x1xf32> to vector<4x256xf32>
    %24 = arith.mulf %23, %19 : vector<4x256xf32>
    %25 = arith.select %21, %19, %24 : vector<4x256xi1>, vector<4x256xf32>
    %26 = arith.truncf %25 : vector<4x256xf32> to vector<4x256xbf16>
    %c4 = arith.constant 4 : index
    %c0_20 = arith.constant 0 : index
    %27 = vector.load %arg9[%c4, %c0_20] : memref<8x256xbf16, #tpu.memory_space<vmem>>, vector<4x256xbf16>
    tpu.vector_store %arg9[%c4, %c0_20], %26 {strides = array<i32>} : memref<8x256xbf16, #tpu.memory_space<vmem>>, vector<4x256xbf16>,
    return
  }
  func.func @transform_0(%arg0: i32) -> (i32, i32) {
    %c0_i32 = arith.constant 0 : i32
    %c0_i32_0 = arith.constant 0 : i32
    return %c0_i32, %arg0 : i32, i32
  }
  func.func @transform_1(%arg0: i32) -> (i32, i32) {
    %c0_i32 = arith.constant 0 : i32
    %c0_i32_0 = arith.constant 0 : i32
    return %c0_i32, %arg0 : i32, i32
  }
  func.func @transform_2(%arg0: i32) -> (i32, i32) {
    %c0_i32 = arith.constant 0 : i32
    %c0_i32_0 = arith.constant 0 : i32
    %c0_i32_1 = arith.constant 0 : i32
    return %c0_i32, %c0_i32_0 : i32, i32
  }
  func.func @transform_3(%arg0: i32) -> (i32, i32) {
    %c0_i32 = arith.constant 0 : i32
    %c0_i32_0 = arith.constant 0 : i32
    %c0_i32_1 = arith.constant 0 : i32
    return %c0_i32, %c0_i32_0 : i32, i32
  }
  func.func @transform_4(%arg0: i32) -> (i32, i32) {
    %c0_i32 = arith.constant 0 : i32
    %c0_i32_0 = arith.constant 0 : i32
    %c0_i32_1 = arith.constant 0 : i32
    return %c0_i32, %c0_i32_0 : i32, i32
  }
  func.func @transform_5(%arg0: i32) -> (i32, i32) {
    %c0_i32 = arith.constant 0 : i32
    %c0_i32_0 = arith.constant 0 : i32
    %c0_i32_1 = arith.constant 0 : i32
    return %c0_i32, %c0_i32_0 : i32, i32
  }
  func.func @transform_6(%arg0: i32) -> (i32, i32) {
    %c0_i32 = arith.constant 0 : i32
    %c0_i32_0 = arith.constant 0 : i32
    %c0_i32_1 = arith.constant 0 : i32
    return %c0_i32, %c0_i32_0 : i32, i32
  }
  func.func @transform_7(%arg0: i32) -> (i32, i32) {
    %c0_i32 = arith.constant 0 : i32
    %c0_i32_0 = arith.constant 0 : i32
    %c0_i32_1 = arith.constant 0 : i32
    return %c0_i32, %c0_i32_0 : i32, i32
  }
  func.func @transform_8(%arg0: i32) -> (i32, i32) {
    %c0_i32 = arith.constant 0 : i32
    %c0_i32_0 = arith.constant 0 : i32
    return %c0_i32, %arg0 : i32, i32
  }
}

module attributes {stable_mosaic.version = 11 : i64} {
  func.func @_matmul_bias_prelu_kernel(%arg0: i32, %arg1: memref<16x72xbf16, #tpu.memory_space<vmem>>, %arg2: memref<72x256xbf16, #tpu.memory_space<vmem>>, %arg3: memref<16x1xf32, #tpu.memory_space<vmem>>, %arg4: memref<16x1xf32, #tpu.memory_space<vmem>>, %arg5: memref<16x256xf32, #tpu.memory_space<vmem>>) attributes {dimension_semantics = [#tpu.dimension_semantics<parallel>], iteration_bounds = array<i64: 2>, scalar_prefetch = 0 : i64, scratch_operands = 0 : i64, tpu.core_type = #tpu.core_type<tc>, window_params = [{pipeline_mode = #tpu.pipeline_mode<synchronous>, transform_indices = @transform_0, window_bounds = array<i64: 16, 72>}, {transform_indices = @transform_1, window_bounds = array<i64: 72, 256>}, {pipeline_mode = #tpu.pipeline_mode<synchronous>, transform_indices = @transform_2, window_bounds = array<i64: 16, 1>}, {pipeline_mode = #tpu.pipeline_mode<synchronous>, transform_indices = @transform_3, window_bounds = array<i64: 16, 1>}, {transform_indices = @transform_4, window_bounds = array<i64: 16, 256>}]} {
    %c0 = arith.constant 0 : index
    %c0_0 = arith.constant 0 : index
    %0 = vector.load %arg1[%c0, %c0_0] : memref<16x72xbf16, #tpu.memory_space<vmem>>, vector<16x72xbf16>
    %c0_1 = arith.constant 0 : index
    %c0_2 = arith.constant 0 : index
    %1 = vector.load %arg2[%c0_1, %c0_2] : memref<72x256xbf16, #tpu.memory_space<vmem>>, vector<72x256xbf16>
    %cst = arith.constant dense<0.000000e+00> : vector<16x256xf32>
    %2 = tpu.matmul %0, %1, %cst {dimension_numbers = #tpu.dot_dimension_numbers<[1], [0], [0], [1], [0, 0, 1, 1], [], []>} : vector<16x72xbf16>, vector<72x256xbf16>, vector<16x256xf32> -> vector<16x256xf32>
    %c0_3 = arith.constant 0 : index
    %c0_4 = arith.constant 0 : index
    %3 = vector.load %arg3[%c0_3, %c0_4] : memref<16x1xf32, #tpu.memory_space<vmem>>, vector<16x1xf32>
    %4 = vector.broadcast %3 : vector<16x1xf32> to vector<16x256xf32>
    %5 = arith.addf %2, %4 : vector<16x256xf32>
    %cst_5 = arith.constant 0.000000e+00 : f32
    %6 = vector.broadcast %cst_5 : f32 to vector<16x256xf32>
    %7 = arith.cmpf ogt, %5, %6 : vector<16x256xf32>
    %c0_6 = arith.constant 0 : index
    %c0_7 = arith.constant 0 : index
    %8 = vector.load %arg4[%c0_6, %c0_7] : memref<16x1xf32, #tpu.memory_space<vmem>>, vector<16x1xf32>
    %9 = vector.broadcast %8 : vector<16x1xf32> to vector<16x256xf32>
    %10 = arith.mulf %9, %5 : vector<16x256xf32>
    %11 = arith.select %7, %5, %10 : vector<16x256xi1>, vector<16x256xf32>
    %c0_8 = arith.constant 0 : index
    %c0_9 = arith.constant 0 : index
    %12 = vector.load %arg5[%c0_8, %c0_9] : memref<16x256xf32, #tpu.memory_space<vmem>>, vector<16x256xf32>
    tpu.vector_store %arg5[%c0_8, %c0_9], %11 {strides = array<i32>} : memref<16x256xf32, #tpu.memory_space<vmem>>, vector<16x256xf32>,
    return
  }
  func.func @transform_0(%arg0: i32) -> (i32, i32) {
    %c0_i32 = arith.constant 0 : i32
    %c0_i32_0 = arith.constant 0 : i32
    %c0_i32_1 = arith.constant 0 : i32
    return %c0_i32, %c0_i32_0 : i32, i32
  }
  func.func @transform_1(%arg0: i32) -> (i32, i32) {
    %c0_i32 = arith.constant 0 : i32
    %c0_i32_0 = arith.constant 0 : i32
    return %c0_i32, %arg0 : i32, i32
  }
  func.func @transform_2(%arg0: i32) -> (i32, i32) {
    %c0_i32 = arith.constant 0 : i32
    %c0_i32_0 = arith.constant 0 : i32
    %c0_i32_1 = arith.constant 0 : i32
    return %c0_i32, %c0_i32_0 : i32, i32
  }
  func.func @transform_3(%arg0: i32) -> (i32, i32) {
    %c0_i32 = arith.constant 0 : i32
    %c0_i32_0 = arith.constant 0 : i32
    %c0_i32_1 = arith.constant 0 : i32
    return %c0_i32, %c0_i32_0 : i32, i32
  }
  func.func @transform_4(%arg0: i32) -> (i32, i32) {
    %c0_i32 = arith.constant 0 : i32
    %c0_i32_0 = arith.constant 0 : i32
    return %c0_i32, %arg0 : i32, i32
  }
}

</mosaic_0001>

<llo_original>
// kernel: dsc_forward.2
$region0: #{dsc_forward.2}
  #allocation0 [shape = 'u32[]', space=smem, size = 0x4, offset = 0x4, fixed_abs, tag = 'smem constant byte address 0x4 - core index']
  #allocation1 [shape = 'u32[144,128]{1,0:T(1,128)}', space=vmem, size = 0x12000, scoped, tag = 'internal scratch']
  %s0 = inlined_call_operand.vmem [shape: bf16[36,512], index: 0, kind: input, shape index: {}]
  %s1 = inlined_call_operand.vmem [shape: bf16[4,512], index: 1, kind: input, shape index: {}]
  %s2 = inlined_call_operand.vmem [shape: bf16[4,36], index: 2, kind: input, shape index: {}]
  %s3 = inlined_call_operand.vmem [shape: bf16[4,4], index: 3, kind: input, shape index: {}]
  %s4 = inlined_call_operand.vmem [shape: f32[4,1], index: 4, kind: input, shape index: {}]
  %s5 = inlined_call_operand.vmem [shape: f32[4,1], index: 5, kind: input, shape index: {}]
  %s6 = inlined_call_operand.vmem [shape: f32[4,1], index: 6, kind: input, shape index: {}]
  %s7 = inlined_call_operand.vmem [shape: f32[4,1], index: 7, kind: input, shape index: {}]
  %s8 = inlined_call_operand.vmem [shape: bf16[8,512], index: 8, kind: output, shape index: {}]
  %s9 = sld [smem:[#allocation0]]
  $region103: #{dsc_forward.2} parent=0
    _
  %s11 = ssub.s32 1, %s9
  %s12 = scalar_select 0, %s11, %s9
  $region1: #{dsc_forward.2} parent=0
    #allocation2 [shape = 'u8[40960]{0}', space=vmem, size = 0xa000, scoped, tag = 'input window, operand 0']
    loop: start=0, step=1, limit=4
    $region2: #{dsc_forward.2} parent=1 // loop_pre_header
      _
    $region3: #{dsc_forward.2} parent=1 // loop_header
      %s14 = sphi 0, %s18
      %p15 = scmp.ge.s32.totalorder %s14, 4
      %s24 = sphi 0, %s26
      %s27 = sphi 0, %s24
      %s28 = sphi 0, %s27
      %s44 = sphi 0, %s28
      %s50 = sphi 0, %s52
      %s53 = sphi 0, %s50
      %s54 = sphi 0, %s53
      %s70 = sphi 0, %s54
      %s74 = sphi 0, %s74
      %s76 = sphi 0, %s74
      %s77 = sphi 0, %s76
      %s91 = sphi 0, %s77
      %s95 = sphi 0, %s95
      %s97 = sphi 0, %s95
      %s98 = sphi 0, %s97
      %s112 = sphi 0, %s98
      %s116 = sphi 0, %s116
      %s118 = sphi 0, %s116
      %s119 = sphi 0, %s118
      %s133 = sphi 0, %s119
      %s137 = sphi 0, %s137
      %s139 = sphi 0, %s137
      %s140 = sphi 0, %s139
      %s154 = sphi 0, %s140
      %s158 = sphi 0, %s158
      %s160 = sphi 0, %s158
      %s161 = sphi 0, %s160
      %s175 = sphi 0, %s161
      %s179 = sphi 0, %s179
      %s181 = sphi 0, %s179
      %s182 = sphi 0, %s181
      %s196 = sphi 0, %s182
      %s202 = sphi 0, %s204
      %s205 = sphi 0, %s202
      %s206 = sphi 0, %s205
      %s222 = sphi 0, %s206
    $region4: #{dsc_forward.2} parent=1 // loop_header_branch
      %17 = sbr.rel (%p15) target = $region8
    $region5: #{dsc_forward.2} parent=1 // loop_body
      %s19 = ssub.s32 %s14, 1
      %s20 = ssub.s32 %s14, 2
      %s21 = sadd.s32 %s14, 1
      %s22 = ssub.s32 %s14, %s21
      %p23 = scmp.eq.s32.totalorder %s22, 0
      %s25 = sadd.s32 %s24, 1
      %s26 = scalar_select %p23, %s24, %s25
      %p29 = pneg %p23
      %p30 = scmp.eq.s32.totalorder %s14, 1
      %p31 = por %p29, %p30
      %p32 = scmp.ne.s32.totalorder %s24, %s27
      %p33 = scmp.eq.s32.totalorder %s14, 0
      %p34 = por %p32, %p33
      %p35 = scmp.ne.s32.totalorder %s24, %s27
      %p36 = scmp.eq.s32.totalorder %s19, 1
      %p37 = por %p35, %p36
      %p38 = scmp.ne.s32.totalorder %s27, %s28
      %p39 = scmp.eq.s32.totalorder %s19, 0
      %p40 = por %p38, %p39
      %p41 = scmp.ne.s32.totalorder %s27, %s28
      %p42 = scmp.eq.s32.totalorder %s20, 1
      %p43 = por %p41, %p42
      %p45 = scmp.ne.s32.totalorder %s28, %s44
      %p46 = scmp.eq.s32.totalorder %s20, 0
      %p47 = por %p45, %p46
      %s48 = ssub.s32 %s14, %s21
      %p49 = scmp.eq.s32.totalorder %s48, 0
      %s51 = sadd.s32 %s50, 1
      %s52 = scalar_select %p49, %s50, %s51
      %p55 = pneg %p49
      %p56 = scmp.eq.s32.totalorder %s14, 1
      %p57 = por %p55, %p56
      %p58 = scmp.ne.s32.totalorder %s50, %s53
      %p59 = scmp.eq.s32.totalorder %s14, 0
      %p60 = por %p58, %p59
      %p61 = scmp.ne.s32.totalorder %s50, %s53
      %p62 = scmp.eq.s32.totalorder %s19, 1
      %p63 = por %p61, %p62
      %p64 = scmp.ne.s32.totalorder %s53, %s54
      %p65 = scmp.eq.s32.totalorder %s19, 0
      %p66 = por %p64, %p65
      %p67 = scmp.ne.s32.totalorder %s53, %s54
      %p68 = scmp.eq.s32.totalorder %s20, 1
      %p69 = por %p67, %p68
      %p71 = scmp.ne.s32.totalorder %s54, %s70
      %p72 = scmp.eq.s32.totalorder %s20, 0
      %p73 = por %p71, %p72
      %s75 = sadd.s32 %s74, 1
      %p78 = scmp.eq.s32.totalorder %s14, 1
      %p79 = scmp.ne.s32.totalorder %s74, %s76
      %p80 = scmp.eq.s32.totalorder %s14, 0
      %p81 = por %p79, %p80
      %p82 = scmp.ne.s32.totalorder %s74, %s76
      %p83 = scmp.eq.s32.totalorder %s19, 1
      %p84 = por %p82, %p83
      %p85 = scmp.ne.s32.totalorder %s76, %s77
      %p86 = scmp.eq.s32.totalorder %s19, 0
      %p87 = por %p85, %p86
      %p88 = scmp.ne.s32.totalorder %s76, %s77
      %p89 = scmp.eq.s32.totalorder %s20, 1
      %p90 = por %p88, %p89
      %p92 = scmp.ne.s32.totalorder %s77, %s91
      %p93 = scmp.eq.s32.totalorder %s20, 0
      %p94 = por %p92, %p93
      %s96 = sadd.s32 %s95, 1
      %p99 = scmp.eq.s32.totalorder %s14, 1
      %p100 = scmp.ne.s32.totalorder %s95, %s97
      %p101 = scmp.eq.s32.totalorder %s14, 0
      %p102 = por %p100, %p101
      %p103 = scmp.ne.s32.totalorder %s95, %s97
      %p104 = scmp.eq.s32.totalorder %s19, 1
      %p105 = por %p103, %p104
      %p106 = scmp.ne.s32.totalorder %s97, %s98
      %p107 = scmp.eq.s32.totalorder %s19, 0
      %p108 = por %p106, %p107
      %p109 = scmp.ne.s32.totalorder %s97, %s98
      %p110 = scmp.eq.s32.totalorder %s20, 1
      %p111 = por %p109, %p110
      %p113 = scmp.ne.s32.totalorder %s98, %s112
      %p114 = scmp.eq.s32.totalorder %s20, 0
      %p115 = por %p113, %p114
      %s117 = sadd.s32 %s116, 1
      %p120 = scmp.eq.s32.totalorder %s14, 1
      %p121 = scmp.ne.s32.totalorder %s116, %s118
      %p122 = scmp.eq.s32.totalorder %s14, 0
      %p123 = por %p121, %p122
      %p124 = scmp.ne.s32.totalorder %s116, %s118
      %p125 = scmp.eq.s32.totalorder %s19, 1
      %p126 = por %p124, %p125
      %p127 = scmp.ne.s32.totalorder %s118, %s119
      %p128 = scmp.eq.s32.totalorder %s19, 0
      %p129 = por %p127, %p128
      %p130 = scmp.ne.s32.totalorder %s118, %s119
      %p131 = scmp.eq.s32.totalorder %s20, 1
      %p132 = por %p130, %p131
      %p134 = scmp.ne.s32.totalorder %s119, %s133
      %p135 = scmp.eq.s32.totalorder %s20, 0
      %p136 = por %p134, %p135
      %s138 = sadd.s32 %s137, 1
      %p141 = scmp.eq.s32.totalorder %s14, 1
      %p142 = scmp.ne.s32.totalorder %s137, %s139
      %p143 = scmp.eq.s32.totalorder %s14, 0
      %p144 = por %p142, %p143
      %p145 = scmp.ne.s32.totalorder %s137, %s139
      %p146 = scmp.eq.s32.totalorder %s19, 1
      %p147 = por %p145, %p146
      %p148 = scmp.ne.s32.totalorder %s139, %s140
      %p149 = scmp.eq.s32.totalorder %s19, 0
      %p150 = por %p148, %p149
      %p151 = scmp.ne.s32.totalorder %s139, %s140
      %p152 = scmp.eq.s32.totalorder %s20, 1
      %p153 = por %p151, %p152
      %p155 = scmp.ne.s32.totalorder %s140, %s154
      %p156 = scmp.eq.s32.totalorder %s20, 0
      %p157 = por %p155, %p156
      %s159 = sadd.s32 %s158, 1
      %p162 = scmp.eq.s32.totalorder %s14, 1
      %p163 = scmp.ne.s32.totalorder %s158, %s160
      %p164 = scmp.eq.s32.totalorder %s14, 0
      %p165 = por %p163, %p164
      %p166 = scmp.ne.s32.totalorder %s158, %s160
      %p167 = scmp.eq.s32.totalorder %s19, 1
      %p168 = por %p166, %p167
      %p169 = scmp.ne.s32.totalorder %s160, %s161
      %p170 = scmp.eq.s32.totalorder %s19, 0
      %p171 = por %p169, %p170
      %p172 = scmp.ne.s32.totalorder %s160, %s161
      %p173 = scmp.eq.s32.totalorder %s20, 1
      %p174 = por %p172, %p173
      %p176 = scmp.ne.s32.totalorder %s161, %s175
      %p177 = scmp.eq.s32.totalorder %s20, 0
      %p178 = por %p176, %p177
      %s180 = sadd.s32 %s179, 1
      %p183 = scmp.eq.s32.totalorder %s14, 1
      %p184 = scmp.ne.s32.totalorder %s179, %s181
      %p185 = scmp.eq.s32.totalorder %s14, 0
      %p186 = por %p184, %p185
      %p187 = scmp.ne.s32.totalorder %s179, %s181
      %p188 = scmp.eq.s32.totalorder %s19, 1
      %p189 = por %p187, %p188
      %p190 = scmp.ne.s32.totalorder %s181, %s182
      %p191 = scmp.eq.s32.totalorder %s19, 0
      %p192 = por %p190, %p191
      %p193 = scmp.ne.s32.totalorder %s181, %s182
      %p194 = scmp.eq.s32.totalorder %s20, 1
      %p195 = por %p193, %p194
      %p197 = scmp.ne.s32.totalorder %s182, %s196
      %p198 = scmp.eq.s32.totalorder %s20, 0
      %p199 = por %p197, %p198
      %s200 = ssub.s32 %s14, %s21
      %p201 = scmp.eq.s32.totalorder %s200, 0
      %s203 = sadd.s32 %s202, 1
      %s204 = scalar_select %p201, %s202, %s203
      %p207 = pneg %p201
      %p208 = scmp.eq.s32.totalorder %s14, 1
      %p209 = por %p207, %p208
      %p210 = scmp.ne.s32.totalorder %s202, %s205
      %p211 = scmp.eq.s32.totalorder %s14, 0
      %p212 = por %p210, %p211
      %p213 = scmp.ne.s32.totalorder %s202, %s205
      %p214 = scmp.eq.s32.totalorder %s19, 1
      %p215 = por %p213, %p214
      %p216 = scmp.ne.s32.totalorder %s205, %s206
      %p217 = scmp.eq.s32.totalorder %s19, 0
      %p218 = por %p216, %p217
      %p219 = scmp.ne.s32.totalorder %s205, %s206
      %p220 = scmp.eq.s32.totalorder %s20, 1
      %p221 = por %p219, %p220
      %p223 = scmp.ne.s32.totalorder %s206, %s222
      %p224 = scmp.eq.s32.totalorder %s20, 0
      %p225 = por %p223, %p224
      %p226 = scmp.le.s32.totalorder 1, %s14
      %p227 = scmp.lt.s32.totalorder %s14, 3
      %p228 = pnand %p226, %p227
      %p229 = pneg %p228
      // Predicated region
      $region9: #{dsc_forward.2} parent=5 // pred_check
        _
      $region10: #{dsc_forward.2} parent=5 // pred_check_branch
        %231 = sbr.rel (%p228) target = $region12
      $region11: #{dsc_forward.2} parent=5 // pred_region
        %s232 = ssub.s32 %s14, 1
        // Predicated region
        $region13: #{dsc_forward.2} parent=11 // pred_check
          %p233 = pneg %p87
        $region14: #{dsc_forward.2} parent=11 // pred_check_branch
          %235 = sbr.rel (%p233) target = $region16
        $region15: #{dsc_forward.2} parent=11 // pred_region
          _
        $region16: #{dsc_forward.2} parent=11 // pred_fallthru
          _
        // Predicated region
        $region17: #{dsc_forward.2} parent=11 // pred_check
          %p236 = pneg %p108
        $region18: #{dsc_forward.2} parent=11 // pred_check_branch
          %238 = sbr.rel (%p236) target = $region20
        $region19: #{dsc_forward.2} parent=11 // pred_region
          _
        $region20: #{dsc_forward.2} parent=11 // pred_fallthru
          _
        // Predicated region
        $region21: #{dsc_forward.2} parent=11 // pred_check
          %p239 = pneg %p129
        $region22: #{dsc_forward.2} parent=11 // pred_check_branch
          %241 = sbr.rel (%p239) target = $region24
        $region23: #{dsc_forward.2} parent=11 // pred_region
          _
        $region24: #{dsc_forward.2} parent=11 // pred_fallthru
          _
        // Predicated region
        $region25: #{dsc_forward.2} parent=11 // pred_check
          %p242 = pneg %p150
        $region26: #{dsc_forward.2} parent=11 // pred_check_branch
          %244 = sbr.rel (%p242) target = $region28
        $region27: #{dsc_forward.2} parent=11 // pred_region
          _
        $region28: #{dsc_forward.2} parent=11 // pred_fallthru
          _
        // Predicated region
        $region29: #{dsc_forward.2} parent=11 // pred_check
          %p245 = pneg %p171
        $region30: #{dsc_forward.2} parent=11 // pred_check_branch
          %247 = sbr.rel (%p245) target = $region32
        $region31: #{dsc_forward.2} parent=11 // pred_region
          _
        $region32: #{dsc_forward.2} parent=11 // pred_fallthru
          _
        // Predicated region
        $region33: #{dsc_forward.2} parent=11 // pred_check
          %p248 = pneg %p192
        $region34: #{dsc_forward.2} parent=11 // pred_check_branch
          %250 = sbr.rel (%p248) target = $region36
        $region35: #{dsc_forward.2} parent=11 // pred_region
          _
        $region36: #{dsc_forward.2} parent=11 // pred_fallthru
          _
      $region12: #{dsc_forward.2} parent=5 // pred_fallthru
        _
      %p251 = scmp.lt.s32.totalorder %s14, 2
      // Predicated region
      $region37: #{dsc_forward.2} parent=5 // pred_check
        %p252 = pneg %p251
      $region38: #{dsc_forward.2} parent=5 // pred_check_branch
        %254 = sbr.rel (%p252) target = $region40
      $region39: #{dsc_forward.2} parent=5 // pred_region
        // Predicated region
        $region41: #{dsc_forward.2} parent=39 // pred_check
          %p255 = pneg %p34
        $region42: #{dsc_forward.2} parent=39 // pred_check_branch
          %257 = sbr.rel (%p255) target = $region44
        $region43: #{dsc_forward.2} parent=39 // pred_region
          %s258 = sand.u32 %s24, 1
          %s259 = sand.u32 %s24, 1
          %s260 = smul.addr %s259, 40
          %s261 = scalar_lea.vmem [#allocation2], %s260
          %s262 = smul.u32 2, %s14
          %s263 = smul.addr %s262, 4
          %s264 = scalar_lea.vmem %s0, %s263
          // Predicated region
          $region45: #{dsc_forward.2} parent=43 // pred_check
            _
          $region46: #{dsc_forward.2} parent=43 // pred_check_branch
            %266 = sbr.rel (0) target = $region48
          $region47: #{dsc_forward.2} parent=43 // pred_region
            // Predicated region
            $region49: #{dsc_forward.2} parent=47 // pred_check
              _
            $region50: #{dsc_forward.2} parent=47 // pred_check_branch
              %268 = sbr.rel (0) target = $region52
            $region51: #{dsc_forward.2} parent=47 // pred_region
              // Predicated region
              $region64: #{dsc_forward.2} parent=51 // pred_check
                _
              $region65: #{dsc_forward.2} parent=51 // pred_check_branch
                %292 = sbr.rel (0) target = $region67
              $region66: #{dsc_forward.2} parent=51 // pred_region
                loop: start=0, step=1, limit=1
                $region68: #{dsc_forward.2} parent=66 // loop_pre_header
                  _
                $region69: #{dsc_forward.2} parent=66 // loop_header
                  %s294 = sphi 0, %s298
                  %p295 = scmp.ge.s32.totalorder %s294, 1
                  %s299 = sphi %s264, %s264
                  %s300 = sphi %s261, %s261
                $region70: #{dsc_forward.2} parent=66 // loop_header_branch
                  %297 = sbr.rel (%p295) target = $region74
                $region71: #{dsc_forward.2} parent=66 // loop_body
                  %v301 = vld [vmem:[%s299] sm:$0xff]
                  %302 = vst [vmem:[%s300] sm:$0xff] %v301
                  %v303 = vld [vmem:[%s299 + $0x10] sm:$0xff]
                  %304 = vst [vmem:[%s300 + $0x8] sm:$0xff] %v303
                  %v305 = vld [vmem:[%s299 + $0x20] sm:$0xff]
                  %306 = vst [vmem:[%s300 + $0x10] sm:$0xff] %v305
                  %v307 = vld [vmem:[%s299 + $0x30] sm:$0xff]
                  %308 = vst [vmem:[%s300 + $0x18] sm:$0xff] %v307
                  %v309 = vld [vmem:[%s299 + $0x40] sm:$0xff]
                  %310 = vst [vmem:[%s300 + $0x20] sm:$0xff] %v309
                $region72: #{dsc_forward.2} parent=66 // loop_footer
                  %s298 = sadd.s32 1, %s294
                $region73: #{dsc_forward.2} parent=66 // loop_footer_branch
                  %293 = sbr.rel target = $region69
                $region74: #{dsc_forward.2} parent=66 // loop_exit
                  _
              $region67: #{dsc_forward.2} parent=51 // pred_fallthru
                _
              // Predicated region
              $region75: #{dsc_forward.2} parent=51 // pred_check
                _
              $region76: #{dsc_forward.2} parent=51 // pred_check_branch
                %312 = sbr.rel target = $region78
              $region77: #{dsc_forward.2} parent=51 // pred_region
                _
              $region78: #{dsc_forward.2} parent=51 // pred_fallthru
                _
            $region52: #{dsc_forward.2} parent=47 // pred_fallthru
              _
            // Predicated region
            $region53: #{dsc_forward.2} parent=47 // pred_check
              _
            $region54: #{dsc_forward.2} parent=47 // pred_check_branch
              %270 = sbr.rel target = $region56
            $region55: #{dsc_forward.2} parent=47 // pred_region
              %s272 = ssub.s32 256, 1
              loop: start=0, step=1, limit=1
              $region57: #{dsc_forward.2} parent=55 // loop_pre_header
                _
              $region58: #{dsc_forward.2} parent=55 // loop_header
                %s274 = sphi 0, %s278
                %p275 = scmp.ge.s32.totalorder %s274, 1
                %s279 = sphi %s264, %s264
                %s280 = sphi %s261, %s261
              $region59: #{dsc_forward.2} parent=55 // loop_header_branch
                %277 = sbr.rel (%p275) target = $region63
              $region60: #{dsc_forward.2} parent=55 // loop_body
                %v281 = vld [vmem:[%s279] sm:%s272]
                %282 = vst [vmem:[%s280] sm:%s272] %v281
                %v283 = vld [vmem:[%s279 + $0x10] sm:%s272]
                %284 = vst [vmem:[%s280 + $0x8] sm:%s272] %v283
                %v285 = vld [vmem:[%s279 + $0x20] sm:%s272]
                %286 = vst [vmem:[%s280 + $0x10] sm:%s272] %v285
                %v287 = vld [vmem:[%s279 + $0x30] sm:%s272]
                %288 = vst [vmem:[%s280 + $0x18] sm:%s272] %v287
                %v289 = vld [vmem:[%s279 + $0x40] sm:%s272]
                %290 = vst [vmem:[%s280 + $0x20] sm:%s272] %v289
              $region61: #{dsc_forward.2} parent=55 // loop_footer
                %s278 = sadd.s32 1, %s274
              $region62: #{dsc_forward.2} parent=55 // loop_footer_branch
                %273 = sbr.rel target = $region58
              $region63: #{dsc_forward.2} parent=55 // loop_exit
                _
            $region56: #{dsc_forward.2} parent=47 // pred_fallthru
              _
          $region48: #{dsc_forward.2} parent=43 // pred_fallthru
            _
          %313 = vnop
        $region44: #{dsc_forward.2} parent=39 // pred_fallthru
          _
        // Predicated region
        $region79: #{dsc_forward.2} parent=39 // pred_check
          %p314 = pneg %p60
        $region80: #{dsc_forward.2} parent=39 // pred_check_branch
          %316 = sbr.rel (%p314) target = $region82
        $region81: #{dsc_forward.2} parent=39 // pred_region
          %s317 = smul.u32 2, %s14
          %p318 = scmp.lt.s32.totalorder %s317, 3
          %s319 = scalar_select %p318, %s317, 3
          %s320 = smul.addr %s319, 2
          %s321 = scalar_lea.vmem %s1, %s320
          %s322 = smul.u32 2, %s14
        $region82: #{dsc_forward.2} parent=39 // pred_fallthru
          _
      $region40: #{dsc_forward.2} parent=5 // pred_fallthru
        _
      %p323 = scmp.le.s32.totalorder 1, %s14
      %p324 = scmp.lt.s32.totalorder %s14, 3
      %p325 = pnand %p323, %p324
      %p326 = pneg %p325
      // Predicated region
      $region83: #{dsc_forward.2} parent=5 // pred_check
        _
      $region84: #{dsc_forward.2} parent=5 // pred_check_branch
        %328 = sbr.rel (%p325) target = $region86
      $region85: #{dsc_forward.2} parent=5 // pred_region
        %s329 = ssub.s32 %s14, 1
        %s330 = sand.u32 %s27, 1
        %s331 = sand.u32 %s27, 1
        %s332 = smul.addr %s331, 40
        %s333 = scalar_lea.vmem [#allocation2], %s332
        // Predicated region
        $region87: #{dsc_forward.2} parent=85 // pred_check
          %p334 = pneg %p40
        $region88: #{dsc_forward.2} parent=85 // pred_check_branch
          %336 = sbr.rel (%p334) target = $region90
        $region89: #{dsc_forward.2} parent=85 // pred_region
          _
        $region90: #{dsc_forward.2} parent=85 // pred_fallthru
          _
        %s337 = sand.u32 %s27, 1
        %s338 = sand.u32 %s27, 1
        %s339 = smul.addr %s338, 40
        %s340 = scalar_lea.vmem [#allocation2], %s339
        %p341 = pneg %p40
        %p342 = pneg %p37
        %s343 = smul.u32 2, %s19
        %p344 = scmp.lt.s32.totalorder %s343, 3
        %s345 = scalar_select %p344, %s343, 3
        %s346 = smul.addr %s345, 2
        %s347 = scalar_lea.vmem %s1, %s346
        %p348 = pneg %p66
        %p349 = pneg %p63
        %p350 = pneg %p87
        %p351 = pneg %p84
        %p352 = pneg %p108
        %p353 = pneg %p105
        %p354 = pneg %p129
        %p355 = pneg %p126
        %p356 = pneg %p150
        %p357 = pneg %p147
        %p358 = pneg %p171
        %p359 = pneg %p168
        %p360 = pneg %p192
        %p361 = pneg %p189
        %p362 = pneg %p218
        %p363 = pneg %p215
        %s364 = smul.u32 2, %s19
        %p365 = scmp.lt.s32.totalorder %s364, 3
        %s366 = scalar_select %p365, %s364, 3
        %s367 = smul.addr %s366, 4
        %s368 = scalar_lea.vmem %s8, %s367
        %s369 = smul.u32 2, %s19
        %s370 = smul.u32 2, %s19
        %p371 = scmp.lt.s32.totalorder %s370, 3
        %s372 = scalar_select %p371, %s370, 3
        %s373 = smul.addr %s372, 2
        %s374 = scalar_lea.vmem %s1, %s373
        %s375 = smul.u32 2, %s19
        %s376 = smul.u32 2, %s19
        %p377 = scmp.lt.s32.totalorder %s376, 3
        %s378 = scalar_select %p377, %s376, 3
        %s379 = smul.addr %s378, 4
        %s380 = scalar_lea.vmem %s8, %s379
        %s381 = smul.u32 2, %s19
        %v383 = vld [vmem:[%s2] sm:$0x3]
        %v384 = vld [vmem:[%s333] sm:$0xff]
        %v385 = vld [vmem:[%s333 + $0x8] sm:$0xff]
        %v386 = vld [vmem:[%s333 + $0x10] sm:$0xff]
        %v387 = vld [vmem:[%s333 + $0x18] sm:$0xff]
        %v388 = vld [vmem:[%s333 + $0x20] sm:$0x33]
        %v389 = vld [vmem:[%s4] sm:$0xf]
        %391 = vset.pattern.permute.xlu0 0
        %392 = vperm.xlu0 %391, %v389
        %v393 = vpop.permute.xlu0 %392
        %v400 = vunpack.c.l.b16 %v384
        %v401 = vunpack.c.h.b16 %v384
        %v402 = vunpack.c.l.b16 %v385
        %v403 = vunpack.c.h.b16 %v385
        %v404 = vunpack.c.l.b16 %v386
        %v405 = vunpack.c.h.b16 %v386
        %v406 = vunpack.c.l.b16 %v387
        %v407 = vunpack.c.h.b16 %v387
        %v408 = vunpack.c.l.b16 %v388
        %v409 = vunpack.c.h.b16 %v388
        %v410 = vpack.c.b16 %v402, %v400
        %v411 = vpack.c.b16 %v403, %v401
        %v412 = vpack.c.b16 %v406, %v404
        %v413 = vpack.c.b16 %v407, %v405
        %v414 = vpack.c.b16 %v408, %v408
        %v415 = vpack.c.b16 %v409, %v409
        %vm420 = vcmask 293888
        %v422 = vsel %vm420, %v383, 0
        %vm424 = vcmask 1041408
        %v426 = vsel %vm424, %v414, 0
        %v429 = vsel %vm424, %v415, 0
        %431 = vmatprep.subr.bf16.mxu0 0
        %432 = vmatpush1.bf16.msra.mxu0 0
        %433 = vmatprep.subr.bf16.mxu0 0
        %434 = vmatpush1.bf16.msra.mxu0 0
        %435 = vmatprep.subr.bf16.mxu0 0
        %436 = vmatpush1.bf16.msra.mxu0 0
        %437 = vmatprep.subr.bf16.mxu0 0
        %438 = vmatpush1.bf16.msra.mxu0 0
        %439 = vmatprep.subr.bf16.mxu0 0
        %440 = vmatpush1.bf16.msra.mxu0 0
        %441 = vmatprep.subr.bf16.mxu0 %v429
        %442 = vmatpush1.bf16.msra.mxu0 %v426
        %443 = vmatprep.subr.bf16.mxu0 %v413
        %444 = vmatpush1.bf16.msra.mxu0 %v412
        %445 = vmatprep.subr.bf16.mxu0 %v411
        %446 = vmatpush1.bf16.msra.mxu0 %v410
        %447 = vmatprep.subr.bf16.mxu0 0
        %448 = vmatpush2.bf16.msra.mxu0 0
        %449 = vmatprep.subr.bf16.mxu0 0
        %450 = vmatpush2.bf16.msra.mxu0 0
        %451 = vmatprep.subr.bf16.mxu0 0
        %452 = vmatpush2.bf16.msra.mxu0 0
        %453 = vmatprep.subr.bf16.mxu0 0
        %454 = vmatpush2.bf16.msra.mxu0 0
        %455 = vmatprep.subr.bf16.mxu0 0
        %456 = vmatpush2.bf16.msra.mxu0 0
        %457 = vmatprep.subr.bf16.mxu0 0
        %458 = vmatpush2.bf16.msra.mxu0 0
        %459 = vmatprep.subr.bf16.mxu0 0
        %460 = vmatpush2.bf16.msra.mxu0 0
        %461 = vmatprep.subr.bf16.mxu0 0
        %462 = vmatpush2.bf16.msra.mxu0 0
        %463 = vmatprep.mubr.bf16.mxu0 0
        %464 = vmatmul.mubr.bf16.gmra.mxu0 %v422
        %v465 = vpop.f32.mrf.mxu0
        %v466 = vadd.f32 %v393, %v465
        %v467 = vpop.f32.mrf.mxu0
        %v468 = vadd.f32 %v393, %v467
        %v469 = vpop.f32.mrf.mxu0
        %v470 = vpop.f32.mrf.mxu0
        %471 = vdwg.mxu0
        %vm472 = vcmp.gt.f32.partialorder %v466, 0.0
        %vm473 = vcmp.gt.f32.partialorder %v468, 0.0
        %v474 = vld [vmem:[%s5] sm:$0xf]
        %476 = vset.pattern.permute.xlu0 0
        %477 = vperm.xlu0 %476, %v474
        %v478 = vpop.permute.xlu0 %477
        %v480 = vmul.f32 %v478, %v466
        %v481 = vmul.f32 %v478, %v468
        %v482 = vsel %vm472, %v466, %v480
        %v483 = vsel %vm473, %v468, %v481
        %v484 = vpack.c.bf16 %v482, %v482
        %v485 = vpack.c.bf16 %v483, %v483
        %v488 = vunpack.c.l.b16 %v484
        %v489 = vunpack.c.l.b16 %v485
        %v490 = vpack.c.b16 %v489, %v488
        %492 = vst [vmem:[%s380] sm:$0x33] %v490
        %v493 = vld [vmem:[%s3] sm:$0x3]
        %v494 = vld [vmem:[%s374] sm:$0xf]
        %v495 = vld [vmem:[%s6] sm:$0xf]
        %497 = vset.pattern.permute.xlu0 0
        %498 = vperm.xlu0 %497, %v495
        %v499 = vpop.permute.xlu0 %498
        %v503 = vunpack.c.l.s4 1983009808
        %v504 = vunpack.c.0.s8 %v503
        %v505 = vlaneseq
        %v506 = vshrl.u32 %v505, 7
        %v507 = vsub.s32 %v504, %v506
        %v508 = vrot.slane %v494, %v507
        %v509 = vcombine.high %v508, %v508
        %vm510 = vcmask 31744
        %v512 = vsel %vm510, %v493, 0
        %v515 = vsel %vm424, %v508, 0
        %v518 = vsel %vm424, %v509, 0
        %520 = vmatprep.subr.bf16.mxu0 0
        %521 = vmatpush1.bf16.msra.mxu0 0
        %522 = vmatprep.subr.bf16.mxu0 0
        %523 = vmatpush1.bf16.msra.mxu0 0
        %524 = vmatprep.subr.bf16.mxu0 0
        %525 = vmatpush1.bf16.msra.mxu0 0
        %526 = vmatprep.subr.bf16.mxu0 0
        %527 = vmatpush1.bf16.msra.mxu0 0
        %528 = vmatprep.subr.bf16.mxu0 0
        %529 = vmatpush1.bf16.msra.mxu0 0
        %530 = vmatprep.subr.bf16.mxu0 0
        %531 = vmatpush1.bf16.msra.mxu0 0
        %532 = vmatprep.subr.bf16.mxu0 0
        %533 = vmatpush1.bf16.msra.mxu0 0
        %534 = vmatprep.subr.bf16.mxu0 %v518
        %535 = vmatpush1.bf16.msra.mxu0 %v515
        %536 = vmatprep.subr.bf16.mxu0 0
        %537 = vmatpush2.bf16.msra.mxu0 0
        %538 = vmatprep.subr.bf16.mxu0 0
        %539 = vmatpush2.bf16.msra.mxu0 0
        %540 = vmatprep.subr.bf16.mxu0 0
        %541 = vmatpush2.bf16.msra.mxu0 0
        %542 = vmatprep.subr.bf16.mxu0 0
        %543 = vmatpush2.bf16.msra.mxu0 0
        %544 = vmatprep.subr.bf16.mxu0 0
        %545 = vmatpush2.bf16.msra.mxu0 0
        %546 = vmatprep.subr.bf16.mxu0 0
        %547 = vmatpush2.bf16.msra.mxu0 0
        %548 = vmatprep.subr.bf16.mxu0 0
        %549 = vmatpush2.bf16.msra.mxu0 0
        %550 = vmatprep.subr.bf16.mxu0 0
        %551 = vmatpush2.bf16.msra.mxu0 0
        %552 = vmatprep.mubr.bf16.mxu0 0
        %553 = vmatmul.mubr.bf16.gmra.mxu0 %v512
        %v554 = vpop.f32.mrf.mxu0
        %v555 = vadd.f32 %v499, %v554
        %v556 = vpop.f32.mrf.mxu0
        %v557 = vadd.f32 %v499, %v556
        %v558 = vpop.f32.mrf.mxu0
        %v559 = vpop.f32.mrf.mxu0
        %560 = vdwg.mxu0
        %vm561 = vcmp.gt.f32.partialorder %v555, 0.0
        %vm562 = vcmp.gt.f32.partialorder %v557, 0.0
        %v563 = vld [vmem:[%s7] sm:$0xf]
        %565 = vset.pattern.permute.xlu0 0
        %566 = vperm.xlu0 %565, %v563
        %v567 = vpop.permute.xlu0 %566
        %v569 = vmul.f32 %v567, %v555
        %v570 = vmul.f32 %v567, %v557
        %v571 = vsel %vm561, %v555, %v569
        %v572 = vsel %vm562, %v557, %v570
        %v573 = vpack.c.bf16 %v571, %v571
        %v574 = vpack.c.bf16 %v572, %v572
        %v577 = vunpack.c.l.b16 %v573
        %v578 = vunpack.c.l.b16 %v574
        %v579 = vpack.c.b16 %v578, %v577
        %v580 = vrot.slane %v579, 6
        %582 = vst [vmem:[%s380] sm:$0xcc] %v580
        %s583 = smul.u32 2, %s19
        %p584 = scmp.lt.s32.totalorder %s583, 3
        %s585 = scalar_select %p584, %s583, 3
        %s586 = smul.addr %s585, 4
        %s587 = scalar_lea.vmem %s8, %s586
        // Predicated region
        $region91: #{dsc_forward.2} parent=85 // pred_check
          %p588 = pneg %p215
        $region92: #{dsc_forward.2} parent=85 // pred_check_branch
          %590 = sbr.rel (%p588) target = $region94
        $region93: #{dsc_forward.2} parent=85 // pred_region
          %s591 = smul.u32 2, %s19
        $region94: #{dsc_forward.2} parent=85 // pred_fallthru
          _
      $region86: #{dsc_forward.2} parent=5 // pred_fallthru
        _
      %p592 = scmp.le.s32.totalorder 2, %s14
      // Predicated region
      $region95: #{dsc_forward.2} parent=5 // pred_check
        %p593 = pneg %p592
      $region96: #{dsc_forward.2} parent=5 // pred_check_branch
        %595 = sbr.rel (%p593) target = $region98
      $region97: #{dsc_forward.2} parent=5 // pred_region
        %s596 = ssub.s32 %s14, 2
        // Predicated region
        $region99: #{dsc_forward.2} parent=97 // pred_check
          %p597 = pneg %p221
        $region100: #{dsc_forward.2} parent=97 // pred_check_branch
          %599 = sbr.rel (%p597) target = $region102
        $region101: #{dsc_forward.2} parent=97 // pred_region
          %s600 = smul.u32 2, %s20
          %p601 = scmp.lt.s32.totalorder %s600, 3
          %s602 = scalar_select %p601, %s600, 3
          %s603 = smul.addr %s602, 4
          %s604 = scalar_lea.vmem %s8, %s603
        $region102: #{dsc_forward.2} parent=97 // pred_fallthru
          _
      $region98: #{dsc_forward.2} parent=5 // pred_fallthru
        _
    $region6: #{dsc_forward.2} parent=1 // loop_footer
      %s18 = sadd.s32 1, %s14
    $region7: #{dsc_forward.2} parent=1 // loop_footer_branch
      %13 = sbr.rel target = $region3
    $region8: #{dsc_forward.2} parent=1 // loop_exit
      _

// kernel: dsc_forward.3
$region0: #{dsc_forward.3}
  #allocation0 [shape = 'u32[]', space=smem, size = 0x4, offset = 0x4, fixed_abs, tag = 'smem constant byte address 0x4 - core index']
  #allocation1 [shape = 'u32[144,128]{1,0:T(1,128)}', space=vmem, size = 0x12000, scoped, tag = 'internal scratch']
  %s0 = inlined_call_operand.vmem [shape: bf16[16,72], index: 0, kind: input, shape index: {}]
  %s1 = inlined_call_operand.vmem [shape: bf16[72,512], index: 1, kind: input, shape index: {}]
  %s2 = inlined_call_operand.vmem [shape: f32[16,1], index: 2, kind: input, shape index: {}]
  %s3 = inlined_call_operand.vmem [shape: f32[16,1], index: 3, kind: input, shape index: {}]
  %s4 = inlined_call_operand.vmem [shape: f32[16,512], index: 4, kind: output, shape index: {}]
  %s5 = sld [smem:[#allocation0]]
  $region106: #{dsc_forward.3} parent=0
    _
  %s7 = ssub.s32 1, %s5
  %s8 = scalar_select 0, %s7, %s5
  $region1: #{dsc_forward.3} parent=0
    #allocation2 [shape = 'u8[73728]{0}', space=vmem, size = 0x12000, scoped, tag = 'input window, operand 1']
    #allocation3 [shape = 'u8[32768]{0}', space=vmem, size = 0x8000, scoped, tag = 'output window, operand 0']
    loop: start=0, step=1, limit=4
    $region2: #{dsc_forward.3} parent=1 // loop_pre_header
      _
    $region3: #{dsc_forward.3} parent=1 // loop_header
      %s10 = sphi 0, %s14
      %p11 = scmp.ge.s32.totalorder %s10, 4
      %s18 = sphi 0, %s18
      %s20 = sphi 0, %s18
      %s21 = sphi 0, %s20
      %s35 = sphi 0, %s21
      %s41 = sphi 0, %s43
      %s44 = sphi 0, %s41
      %s45 = sphi 0, %s44
      %s61 = sphi 0, %s45
      %s65 = sphi 0, %s65
      %s67 = sphi 0, %s65
      %s68 = sphi 0, %s67
      %s82 = sphi 0, %s68
      %s86 = sphi 0, %s86
      %s88 = sphi 0, %s86
      %s89 = sphi 0, %s88
      %s103 = sphi 0, %s89
      %s109 = sphi 0, %s111
      %s112 = sphi 0, %s109
      %s113 = sphi 0, %s112
      %s129 = sphi 0, %s113
    $region4: #{dsc_forward.3} parent=1 // loop_header_branch
      %13 = sbr.rel (%p11) target = $region8
    $region5: #{dsc_forward.3} parent=1 // loop_body
      %s15 = ssub.s32 %s10, 1
      %s16 = ssub.s32 %s10, 2
      %s17 = sadd.s32 %s10, 1
      %s19 = sadd.s32 %s18, 1
      %p22 = scmp.eq.s32.totalorder %s10, 1
      %p23 = scmp.ne.s32.totalorder %s18, %s20
      %p24 = scmp.eq.s32.totalorder %s10, 0
      %p25 = por %p23, %p24
      %p26 = scmp.ne.s32.totalorder %s18, %s20
      %p27 = scmp.eq.s32.totalorder %s15, 1
      %p28 = por %p26, %p27
      %p29 = scmp.ne.s32.totalorder %s20, %s21
      %p30 = scmp.eq.s32.totalorder %s15, 0
      %p31 = por %p29, %p30
      %p32 = scmp.ne.s32.totalorder %s20, %s21
      %p33 = scmp.eq.s32.totalorder %s16, 1
      %p34 = por %p32, %p33
      %p36 = scmp.ne.s32.totalorder %s21, %s35
      %p37 = scmp.eq.s32.totalorder %s16, 0
      %p38 = por %p36, %p37
      %s39 = ssub.s32 %s10, %s17
      %p40 = scmp.eq.s32.totalorder %s39, 0
      %s42 = sadd.s32 %s41, 1
      %s43 = scalar_select %p40, %s41, %s42
      %p46 = pneg %p40
      %p47 = scmp.eq.s32.totalorder %s10, 1
      %p48 = por %p46, %p47
      %p49 = scmp.ne.s32.totalorder %s41, %s44
      %p50 = scmp.eq.s32.totalorder %s10, 0
      %p51 = por %p49, %p50
      %p52 = scmp.ne.s32.totalorder %s41, %s44
      %p53 = scmp.eq.s32.totalorder %s15, 1
      %p54 = por %p52, %p53
      %p55 = scmp.ne.s32.totalorder %s44, %s45
      %p56 = scmp.eq.s32.totalorder %s15, 0
      %p57 = por %p55, %p56
      %p58 = scmp.ne.s32.totalorder %s44, %s45
      %p59 = scmp.eq.s32.totalorder %s16, 1
      %p60 = por %p58, %p59
      %p62 = scmp.ne.s32.totalorder %s45, %s61
      %p63 = scmp.eq.s32.totalorder %s16, 0
      %p64 = por %p62, %p63
      %s66 = sadd.s32 %s65, 1
      %p69 = scmp.eq.s32.totalorder %s10, 1
      %p70 = scmp.ne.s32.totalorder %s65, %s67
      %p71 = scmp.eq.s32.totalorder %s10, 0
      %p72 = por %p70, %p71
      %p73 = scmp.ne.s32.totalorder %s65, %s67
      %p74 = scmp.eq.s32.totalorder %s15, 1
      %p75 = por %p73, %p74
      %p76 = scmp.ne.s32.totalorder %s67, %s68
      %p77 = scmp.eq.s32.totalorder %s15, 0
      %p78 = por %p76, %p77
      %p79 = scmp.ne.s32.totalorder %s67, %s68
      %p80 = scmp.eq.s32.totalorder %s16, 1
      %p81 = por %p79, %p80
      %p83 = scmp.ne.s32.totalorder %s68, %s82
      %p84 = scmp.eq.s32.totalorder %s16, 0
      %p85 = por %p83, %p84
      %s87 = sadd.s32 %s86, 1
      %p90 = scmp.eq.s32.totalorder %s10, 1
      %p91 = scmp.ne.s32.totalorder %s86, %s88
      %p92 = scmp.eq.s32.totalorder %s10, 0
      %p93 = por %p91, %p92
      %p94 = scmp.ne.s32.totalorder %s86, %s88
      %p95 = scmp.eq.s32.totalorder %s15, 1
      %p96 = por %p94, %p95
      %p97 = scmp.ne.s32.totalorder %s88, %s89
      %p98 = scmp.eq.s32.totalorder %s15, 0
      %p99 = por %p97, %p98
      %p100 = scmp.ne.s32.totalorder %s88, %s89
      %p101 = scmp.eq.s32.totalorder %s16, 1
      %p102 = por %p100, %p101
      %p104 = scmp.ne.s32.totalorder %s89, %s103
      %p105 = scmp.eq.s32.totalorder %s16, 0
      %p106 = por %p104, %p105
      %s107 = ssub.s32 %s10, %s17
      %p108 = scmp.eq.s32.totalorder %s107, 0
      %s110 = sadd.s32 %s109, 1
      %s111 = scalar_select %p108, %s109, %s110
      %p114 = pneg %p108
      %p115 = scmp.eq.s32.totalorder %s10, 1
      %p116 = por %p114, %p115
      %p117 = scmp.ne.s32.totalorder %s109, %s112
      %p118 = scmp.eq.s32.totalorder %s10, 0
      %p119 = por %p117, %p118
      %p120 = scmp.ne.s32.totalorder %s109, %s112
      %p121 = scmp.eq.s32.totalorder %s15, 1
      %p122 = por %p120, %p121
      %p123 = scmp.ne.s32.totalorder %s112, %s113
      %p124 = scmp.eq.s32.totalorder %s15, 0
      %p125 = por %p123, %p124
      %p126 = scmp.ne.s32.totalorder %s112, %s113
      %p127 = scmp.eq.s32.totalorder %s16, 1
      %p128 = por %p126, %p127
      %p130 = scmp.ne.s32.totalorder %s113, %s129
      %p131 = scmp.eq.s32.totalorder %s16, 0
      %p132 = por %p130, %p131
      %p133 = scmp.le.s32.totalorder 1, %s10
      %p134 = scmp.lt.s32.totalorder %s10, 3
      %p135 = pnand %p133, %p134
      %p136 = pneg %p135
      // Predicated region
      $region9: #{dsc_forward.3} parent=5 // pred_check
        _
      $region10: #{dsc_forward.3} parent=5 // pred_check_branch
        %138 = sbr.rel (%p135) target = $region12
      $region11: #{dsc_forward.3} parent=5 // pred_region
        %s139 = ssub.s32 %s10, 1
        // Predicated region
        $region13: #{dsc_forward.3} parent=11 // pred_check
          %p140 = pneg %p31
        $region14: #{dsc_forward.3} parent=11 // pred_check_branch
          %142 = sbr.rel (%p140) target = $region16
        $region15: #{dsc_forward.3} parent=11 // pred_region
          _
        $region16: #{dsc_forward.3} parent=11 // pred_fallthru
          _
        // Predicated region
        $region17: #{dsc_forward.3} parent=11 // pred_check
          %p143 = pneg %p78
        $region18: #{dsc_forward.3} parent=11 // pred_check_branch
          %145 = sbr.rel (%p143) target = $region20
        $region19: #{dsc_forward.3} parent=11 // pred_region
          _
        $region20: #{dsc_forward.3} parent=11 // pred_fallthru
          _
        // Predicated region
        $region21: #{dsc_forward.3} parent=11 // pred_check
          %p146 = pneg %p99
        $region22: #{dsc_forward.3} parent=11 // pred_check_branch
          %148 = sbr.rel (%p146) target = $region24
        $region23: #{dsc_forward.3} parent=11 // pred_region
          _
        $region24: #{dsc_forward.3} parent=11 // pred_fallthru
          _
      $region12: #{dsc_forward.3} parent=5 // pred_fallthru
        _
      %p149 = scmp.lt.s32.totalorder %s10, 2
      // Predicated region
      $region25: #{dsc_forward.3} parent=5 // pred_check
        %p150 = pneg %p149
      $region26: #{dsc_forward.3} parent=5 // pred_check_branch
        %152 = sbr.rel (%p150) target = $region28
      $region27: #{dsc_forward.3} parent=5 // pred_region
        // Predicated region
        $region29: #{dsc_forward.3} parent=27 // pred_check
          %p153 = pneg %p51
        $region30: #{dsc_forward.3} parent=27 // pred_check_branch
          %155 = sbr.rel (%p153) target = $region32
        $region31: #{dsc_forward.3} parent=27 // pred_region
          %s156 = sand.u32 %s41, 1
          %s157 = sand.u32 %s41, 1
          %s158 = smul.addr %s157, 72
          %s159 = scalar_lea.vmem [#allocation2], %s158
          %s160 = smul.u32 2, %s10
          %s161 = smul.addr %s160, 4
          %s162 = scalar_lea.vmem %s1, %s161
          // Predicated region
          $region33: #{dsc_forward.3} parent=31 // pred_check
            _
          $region34: #{dsc_forward.3} parent=31 // pred_check_branch
            %164 = sbr.rel (0) target = $region36
          $region35: #{dsc_forward.3} parent=31 // pred_region
            // Predicated region
            $region37: #{dsc_forward.3} parent=35 // pred_check
              _
            $region38: #{dsc_forward.3} parent=35 // pred_check_branch
              %166 = sbr.rel (0) target = $region40
            $region39: #{dsc_forward.3} parent=35 // pred_region
              // Predicated region
              $region52: #{dsc_forward.3} parent=39 // pred_check
                _
              $region53: #{dsc_forward.3} parent=39 // pred_check_branch
                %198 = sbr.rel (0) target = $region55
              $region54: #{dsc_forward.3} parent=39 // pred_region
                loop: start=0, step=1, limit=1
                $region56: #{dsc_forward.3} parent=54 // loop_pre_header
                  _
                $region57: #{dsc_forward.3} parent=54 // loop_header
                  %s200 = sphi 0, %s204
                  %p201 = scmp.ge.s32.totalorder %s200, 1
                  %s205 = sphi %s162, %s162
                  %s206 = sphi %s159, %s159
                $region58: #{dsc_forward.3} parent=54 // loop_header_branch
                  %203 = sbr.rel (%p201) target = $region62
                $region59: #{dsc_forward.3} parent=54 // loop_body
                  %v207 = vld [vmem:[%s205] sm:$0xff]
                  %208 = vst [vmem:[%s206] sm:$0xff] %v207
                  %v209 = vld [vmem:[%s205 + $0x10] sm:$0xff]
                  %210 = vst [vmem:[%s206 + $0x8] sm:$0xff] %v209
                  %v211 = vld [vmem:[%s205 + $0x20] sm:$0xff]
                  %212 = vst [vmem:[%s206 + $0x10] sm:$0xff] %v211
                  %v213 = vld [vmem:[%s205 + $0x30] sm:$0xff]
                  %214 = vst [vmem:[%s206 + $0x18] sm:$0xff] %v213
                  %v215 = vld [vmem:[%s205 + $0x40] sm:$0xff]
                  %216 = vst [vmem:[%s206 + $0x20] sm:$0xff] %v215
                  %v217 = vld [vmem:[%s205 + $0x50] sm:$0xff]
                  %218 = vst [vmem:[%s206 + $0x28] sm:$0xff] %v217
                  %v219 = vld [vmem:[%s205 + $0x60] sm:$0xff]
                  %220 = vst [vmem:[%s206 + $0x30] sm:$0xff] %v219
                  %v221 = vld [vmem:[%s205 + $0x70] sm:$0xff]
                  %222 = vst [vmem:[%s206 + $0x38] sm:$0xff] %v221
                  %v223 = vld [vmem:[%s205 + $0x80] sm:$0xff]
                  %224 = vst [vmem:[%s206 + $0x40] sm:$0xff] %v223
                $region60: #{dsc_forward.3} parent=54 // loop_footer
                  %s204 = sadd.s32 1, %s200
                $region61: #{dsc_forward.3} parent=54 // loop_footer_branch
                  %199 = sbr.rel target = $region57
                $region62: #{dsc_forward.3} parent=54 // loop_exit
                  _
              $region55: #{dsc_forward.3} parent=39 // pred_fallthru
                _
              // Predicated region
              $region63: #{dsc_forward.3} parent=39 // pred_check
                _
              $region64: #{dsc_forward.3} parent=39 // pred_check_branch
                %226 = sbr.rel target = $region66
              $region65: #{dsc_forward.3} parent=39 // pred_region
                _
              $region66: #{dsc_forward.3} parent=39 // pred_fallthru
                _
            $region40: #{dsc_forward.3} parent=35 // pred_fallthru
              _
            // Predicated region
            $region41: #{dsc_forward.3} parent=35 // pred_check
              _
            $region42: #{dsc_forward.3} parent=35 // pred_check_branch
              %168 = sbr.rel target = $region44
            $region43: #{dsc_forward.3} parent=35 // pred_region
              %s170 = ssub.s32 256, 1
              loop: start=0, step=1, limit=1
              $region45: #{dsc_forward.3} parent=43 // loop_pre_header
                _
              $region46: #{dsc_forward.3} parent=43 // loop_header
                %s172 = sphi 0, %s176
                %p173 = scmp.ge.s32.totalorder %s172, 1
                %s177 = sphi %s162, %s162
                %s178 = sphi %s159, %s159
              $region47: #{dsc_forward.3} parent=43 // loop_header_branch
                %175 = sbr.rel (%p173) target = $region51
              $region48: #{dsc_forward.3} parent=43 // loop_body
                %v179 = vld [vmem:[%s177] sm:%s170]
                %180 = vst [vmem:[%s178] sm:%s170] %v179
                %v181 = vld [vmem:[%s177 + $0x10] sm:%s170]
                %182 = vst [vmem:[%s178 + $0x8] sm:%s170] %v181
                %v183 = vld [vmem:[%s177 + $0x20] sm:%s170]
                %184 = vst [vmem:[%s178 + $0x10] sm:%s170] %v183
                %v185 = vld [vmem:[%s177 + $0x30] sm:%s170]
                %186 = vst [vmem:[%s178 + $0x18] sm:%s170] %v185
                %v187 = vld [vmem:[%s177 + $0x40] sm:%s170]
                %188 = vst [vmem:[%s178 + $0x20] sm:%s170] %v187
                %v189 = vld [vmem:[%s177 + $0x50] sm:%s170]
                %190 = vst [vmem:[%s178 + $0x28] sm:%s170] %v189
                %v191 = vld [vmem:[%s177 + $0x60] sm:%s170]
                %192 = vst [vmem:[%s178 + $0x30] sm:%s170] %v191
                %v193 = vld [vmem:[%s177 + $0x70] sm:%s170]
                %194 = vst [vmem:[%s178 + $0x38] sm:%s170] %v193
                %v195 = vld [vmem:[%s177 + $0x80] sm:%s170]
                %196 = vst [vmem:[%s178 + $0x40] sm:%s170] %v195
              $region49: #{dsc_forward.3} parent=43 // loop_footer
                %s176 = sadd.s32 1, %s172
              $region50: #{dsc_forward.3} parent=43 // loop_footer_branch
                %171 = sbr.rel target = $region46
              $region51: #{dsc_forward.3} parent=43 // loop_exit
                _
            $region44: #{dsc_forward.3} parent=35 // pred_fallthru
              _
          $region36: #{dsc_forward.3} parent=31 // pred_fallthru
            _
          %227 = vnop
        $region32: #{dsc_forward.3} parent=27 // pred_fallthru
          _
      $region28: #{dsc_forward.3} parent=5 // pred_fallthru
        _
      %p228 = scmp.le.s32.totalorder 1, %s10
      %p229 = scmp.lt.s32.totalorder %s10, 3
      %p230 = pnand %p228, %p229
      %p231 = pneg %p230
      // Predicated region
      $region67: #{dsc_forward.3} parent=5 // pred_check
        _
      $region68: #{dsc_forward.3} parent=5 // pred_check_branch
        %233 = sbr.rel (%p230) target = $region70
      $region69: #{dsc_forward.3} parent=5 // pred_region
        %s234 = ssub.s32 %s10, 1
        %s235 = sand.u32 %s44, 1
        %s236 = sand.u32 %s44, 1
        %s237 = smul.addr %s236, 72
        %s238 = scalar_lea.vmem [#allocation2], %s237
        // Predicated region
        $region71: #{dsc_forward.3} parent=69 // pred_check
          %p239 = pneg %p57
        $region72: #{dsc_forward.3} parent=69 // pred_check_branch
          %241 = sbr.rel (%p239) target = $region74
        $region73: #{dsc_forward.3} parent=69 // pred_region
          _
        $region74: #{dsc_forward.3} parent=69 // pred_fallthru
          _
        %p242 = pneg %p31
        %p243 = pneg %p28
        %s244 = sand.u32 %s44, 1
        %s245 = sand.u32 %s44, 1
        %s246 = smul.addr %s245, 72
        %s247 = scalar_lea.vmem [#allocation2], %s246
        %p248 = pneg %p57
        %p249 = pneg %p54
        %p250 = pneg %p78
        %p251 = pneg %p75
        %p252 = pneg %p99
        %p253 = pneg %p96
        %p254 = pneg %p125
        %p255 = pneg %p122
        %s256 = sand.u32 %s112, 1
        %s257 = sand.u32 %s112, 1
        %s258 = smul.addr %s257, 32
        %s259 = scalar_lea.vmem [#allocation3], %s258
        %s260 = smul.u32 2, %s15
        %s261 = smul.u32 2, %s15
        %v263 = vld [vmem:[%s0] sm:$0xf]
        %v264 = vld [vmem:[%s0 + $0x4] sm:$0xf]
        %v265 = vld [vmem:[%s238] sm:$0xff]
        %v266 = vld [vmem:[%s238 + $0x8] sm:$0xff]
        %v267 = vld [vmem:[%s238 + $0x10] sm:$0xff]
        %v268 = vld [vmem:[%s238 + $0x18] sm:$0xff]
        %v269 = vld [vmem:[%s238 + $0x20] sm:$0xff]
        %v270 = vld [vmem:[%s238 + $0x28] sm:$0xff]
        %v271 = vld [vmem:[%s238 + $0x30] sm:$0xff]
        %v272 = vld [vmem:[%s238 + $0x38] sm:$0xff]
        %v273 = vld [vmem:[%s238 + $0x40] sm:$0xff]
        %v274 = vld [vmem:[%s2] sm:$0xff]
        %v275 = vld [vmem:[%s2 + $0x8] sm:$0xff]
        %277 = vset.pattern.permute.xlu0 0
        %278 = vperm.xlu0 %277, %v274
        %v279 = vpop.permute.xlu0 %278
        %282 = vset.pattern.permute.xlu0 0
        %283 = vperm.xlu0 %282, %v275
        %v284 = vpop.permute.xlu0 %283
        %v288 = vunpack.c.l.b16 %v263
        %v289 = vunpack.c.l.b16 %v264
        %v290 = vpack.c.b16 %v289, %v288
        %v300 = vunpack.c.l.b16 %v265
        %v301 = vunpack.c.h.b16 %v265
        %v302 = vunpack.c.l.b16 %v266
        %v303 = vunpack.c.h.b16 %v266
        %v304 = vunpack.c.l.b16 %v267
        %v305 = vunpack.c.h.b16 %v267
        %v306 = vunpack.c.l.b16 %v268
        %v307 = vunpack.c.h.b16 %v268
        %v308 = vunpack.c.l.b16 %v269
        %v309 = vunpack.c.h.b16 %v269
        %v310 = vunpack.c.l.b16 %v270
        %v311 = vunpack.c.h.b16 %v270
        %v312 = vunpack.c.l.b16 %v271
        %v313 = vunpack.c.h.b16 %v271
        %v314 = vunpack.c.l.b16 %v272
        %v315 = vunpack.c.h.b16 %v272
        %v316 = vunpack.c.l.b16 %v273
        %v317 = vunpack.c.h.b16 %v273
        %v318 = vpack.c.b16 %v302, %v300
        %v319 = vpack.c.b16 %v303, %v301
        %v320 = vpack.c.b16 %v306, %v304
        %v321 = vpack.c.b16 %v307, %v305
        %v322 = vpack.c.b16 %v310, %v308
        %v323 = vpack.c.b16 %v311, %v309
        %v324 = vpack.c.b16 %v314, %v312
        %v325 = vpack.c.b16 %v315, %v313
        %v326 = vpack.c.b16 %v316, %v316
        %v327 = vpack.c.b16 %v317, %v317
        %vm336 = vcmask 588800
        %v338 = vsel %vm336, %v290, 0
        %vm340 = vcmask 1043456
        %v342 = vsel %vm340, %v326, 0
        %v345 = vsel %vm340, %v327, 0
        %347 = vmatprep.subr.bf16.mxu0 0
        %348 = vmatpush1.bf16.msra.mxu0 0
        %349 = vmatprep.subr.bf16.mxu0 0
        %350 = vmatpush1.bf16.msra.mxu0 0
        %351 = vmatprep.subr.bf16.mxu0 0
        %352 = vmatpush1.bf16.msra.mxu0 0
        %353 = vmatprep.subr.bf16.mxu0 %v345
        %354 = vmatpush1.bf16.msra.mxu0 %v342
        %355 = vmatprep.subr.bf16.mxu0 %v325
        %356 = vmatpush1.bf16.msra.mxu0 %v324
        %357 = vmatprep.subr.bf16.mxu0 %v323
        %358 = vmatpush1.bf16.msra.mxu0 %v322
        %359 = vmatprep.subr.bf16.mxu0 %v321
        %360 = vmatpush1.bf16.msra.mxu0 %v320
        %361 = vmatprep.subr.bf16.mxu0 %v319
        %362 = vmatpush1.bf16.msra.mxu0 %v318
        %363 = vmatprep.subr.bf16.mxu0 0
        %364 = vmatpush2.bf16.msra.mxu0 0
        %365 = vmatprep.subr.bf16.mxu0 0
        %366 = vmatpush2.bf16.msra.mxu0 0
        %367 = vmatprep.subr.bf16.mxu0 0
        %368 = vmatpush2.bf16.msra.mxu0 0
        %369 = vmatprep.subr.bf16.mxu0 0
        %370 = vmatpush2.bf16.msra.mxu0 0
        %371 = vmatprep.subr.bf16.mxu0 0
        %372 = vmatpush2.bf16.msra.mxu0 0
        %373 = vmatprep.subr.bf16.mxu0 0
        %374 = vmatpush2.bf16.msra.mxu0 0
        %375 = vmatprep.subr.bf16.mxu0 0
        %376 = vmatpush2.bf16.msra.mxu0 0
        %377 = vmatprep.subr.bf16.mxu0 0
        %378 = vmatpush2.bf16.msra.mxu0 0
        %379 = vmatprep.mubr.bf16.mxu0 0
        %380 = vmatmul.mubr.bf16.gmra.mxu0 %v338
        %v381 = vpop.f32.mrf.mxu0
        %v382 = vadd.f32 %v279, %v381
        %v383 = vpop.f32.mrf.mxu0
        %v384 = vadd.f32 %v279, %v383
        %v385 = vpop.f32.mrf.mxu0
        %v386 = vadd.f32 %v284, %v385
        %v387 = vpop.f32.mrf.mxu0
        %v388 = vadd.f32 %v284, %v387
        %389 = vdwg.mxu0
        %vm390 = vcmp.gt.f32.partialorder %v382, 0.0
        %vm391 = vcmp.gt.f32.partialorder %v384, 0.0
        %vm392 = vcmp.gt.f32.partialorder %v386, 0.0
        %vm393 = vcmp.gt.f32.partialorder %v388, 0.0
        %v394 = vld [vmem:[%s3] sm:$0xff]
        %v395 = vld [vmem:[%s3 + $0x8] sm:$0xff]
        %397 = vset.pattern.permute.xlu0 0
        %398 = vperm.xlu0 %397, %v394
        %v399 = vpop.permute.xlu0 %398
        %402 = vset.pattern.permute.xlu0 0
        %403 = vperm.xlu0 %402, %v395
        %v404 = vpop.permute.xlu0 %403
        %v406 = vmul.f32 %v399, %v382
        %v407 = vmul.f32 %v399, %v384
        %v408 = vmul.f32 %v404, %v386
        %v409 = vmul.f32 %v404, %v388
        %v410 = vsel %vm390, %v382, %v406
        %v411 = vsel %vm391, %v384, %v407
        %v412 = vsel %vm392, %v386, %v408
        %v413 = vsel %vm393, %v388, %v409
        %414 = vst [vmem:[%s259] sm:$0xff] %v410
        %415 = vst [vmem:[%s259 + $0x8] sm:$0xff] %v411
        %416 = vst [vmem:[%s259 + $0x10] sm:$0xff] %v412
        %417 = vst [vmem:[%s259 + $0x18] sm:$0xff] %v413
        %s418 = sand.u32 %s112, 1
        %s419 = sand.u32 %s112, 1
        %s420 = smul.addr %s419, 32
        %s421 = scalar_lea.vmem [#allocation3], %s420
        // Predicated region
        $region75: #{dsc_forward.3} parent=69 // pred_check
          %p422 = pneg %p122
        $region76: #{dsc_forward.3} parent=69 // pred_check_branch
          %424 = sbr.rel (%p422) target = $region78
        $region77: #{dsc_forward.3} parent=69 // pred_region
          %s425 = smul.u32 2, %s15
          %s426 = smul.addr %s425, 8
          %s427 = scalar_lea.vmem %s4, %s426
          // Predicated region
          $region79: #{dsc_forward.3} parent=77 // pred_check
            _
          $region80: #{dsc_forward.3} parent=77 // pred_check_branch
            %429 = sbr.rel (0) target = $region82
          $region81: #{dsc_forward.3} parent=77 // pred_region
            // Predicated region
            $region83: #{dsc_forward.3} parent=81 // pred_check
              _
            $region84: #{dsc_forward.3} parent=81 // pred_check_branch
              %431 = sbr.rel (0) target = $region86
            $region85: #{dsc_forward.3} parent=81 // pred_region
              loop: start=0, step=1, limit=1
              $region87: #{dsc_forward.3} parent=85 // loop_pre_header
                _
              $region88: #{dsc_forward.3} parent=85 // loop_header
                %s433 = sphi 0, %s437
                %p434 = scmp.ge.s32.totalorder %s433, 1
                %s438 = sphi %s421, %s421
                %s439 = sphi %s427, %s427
              $region89: #{dsc_forward.3} parent=85 // loop_header_branch
                %436 = sbr.rel (%p434) target = $region93
              $region90: #{dsc_forward.3} parent=85 // loop_body
                %v440 = vld [vmem:[%s438] sm:$0xff]
                %441 = vst [vmem:[%s439] sm:$0xff] %v440
                %v442 = vld [vmem:[%s438 + $0x8] sm:$0xff]
                %443 = vst [vmem:[%s439 + $0x8] sm:$0xff] %v442
                %v444 = vld [vmem:[%s438 + $0x10] sm:$0xff]
                %445 = vst [vmem:[%s439 + $0x20] sm:$0xff] %v444
                %v446 = vld [vmem:[%s438 + $0x18] sm:$0xff]
                %447 = vst [vmem:[%s439 + $0x28] sm:$0xff] %v446
              $region91: #{dsc_forward.3} parent=85 // loop_footer
                %s437 = sadd.s32 1, %s433
              $region92: #{dsc_forward.3} parent=85 // loop_footer_branch
                %432 = sbr.rel target = $region88
              $region93: #{dsc_forward.3} parent=85 // loop_exit
                _
            $region86: #{dsc_forward.3} parent=81 // pred_fallthru
              _
            // Predicated region
            $region94: #{dsc_forward.3} parent=81 // pred_check
              _
            $region95: #{dsc_forward.3} parent=81 // pred_check_branch
              %449 = sbr.rel target = $region97
            $region96: #{dsc_forward.3} parent=81 // pred_region
              _
            $region97: #{dsc_forward.3} parent=81 // pred_fallthru
              _
          $region82: #{dsc_forward.3} parent=77 // pred_fallthru
            _
          %450 = vnop
        $region78: #{dsc_forward.3} parent=69 // pred_fallthru
          _
      $region70: #{dsc_forward.3} parent=5 // pred_fallthru
        _
      %p451 = scmp.le.s32.totalorder 2, %s10
      // Predicated region
      $region98: #{dsc_forward.3} parent=5 // pred_check
        %p452 = pneg %p451
      $region99: #{dsc_forward.3} parent=5 // pred_check_branch
        %454 = sbr.rel (%p452) target = $region101
      $region100: #{dsc_forward.3} parent=5 // pred_region
        %s455 = ssub.s32 %s10, 2
        // Predicated region
        $region102: #{dsc_forward.3} parent=100 // pred_check
          %p456 = pneg %p128
        $region103: #{dsc_forward.3} parent=100 // pred_check_branch
          %458 = sbr.rel (%p456) target = $region105
        $region104: #{dsc_forward.3} parent=100 // pred_region
          %s459 = sand.u32 %s113, 1
          %s460 = sand.u32 %s113, 1
          %s461 = smul.addr %s460, 32
          %s462 = scalar_lea.vmem [#allocation3], %s461
        $region105: #{dsc_forward.3} parent=100 // pred_fallthru
          _
      $region101: #{dsc_forward.3} parent=5 // pred_fallthru
        _
    $region6: #{dsc_forward.3} parent=1 // loop_footer
      %s14 = sadd.s32 1, %s10
    $region7: #{dsc_forward.3} parent=1 // loop_footer_branch
      %9 = sbr.rel target = $region3
    $region8: #{dsc_forward.3} parent=1 // loop_exit
      _

</llo_original>
